<compile_context>
chip_gen: v6e
topology: v6e:2x2x1
jax: 0.10.0
libtpu: 0.0.40
codegen_flags: <defaults>
</compile_context>

<pallas_src>
import math

import jax
import jax.numpy as jnp
from jax.experimental import pallas as pl
from jax.experimental.pallas import tpu as pltpu

PAD = 128  # lane-dense padded width for the hidden / output feature dims


def mlp_kernel(x_ref, w1_ref, w23_ref, b_ref, o_ref):
    # x_ref:   (TB, d_in_pad)   bf16
    # w1_ref:  (d_in_pad, PAD)  bf16
    # w23_ref: (2, PAD, PAD)    bf16
    # b_ref:   (3, PAD)         f32
    # o_ref:   (TB, PAD)        bf16
    x = x_ref[...]
    # hidden layer 1: relu(x @ W1 + b1), f32 accumulation
    h1 = jnp.dot(x, w1_ref[...], preferred_element_type=jnp.float32)
    h1 = jnp.maximum(h1 + b_ref[0:1, :], 0.0)
    # hidden layer 2: relu(h1 @ W2 + b2)
    h2 = jnp.dot(h1.astype(jnp.bfloat16), w23_ref[0], preferred_element_type=jnp.float32)
    h2 = jnp.maximum(h2 + b_ref[1:2, :], 0.0)
    # output layer: h2 @ W3 + b3 (raw logits, no activation — matches the module)
    out = jnp.dot(h2.astype(jnp.bfloat16), w23_ref[1], preferred_element_type=jnp.float32)
    o_ref[...] = (out + b_ref[2:3, :]).astype(o_ref.dtype)


def _pad_to(a, shape):
    return jnp.pad(a, [(0, s - d) for d, s in zip(a.shape, shape)])


def _round_up(x, m):
    return ((x + m - 1) // m) * m


def _pick_tile_b(B, desired=1024):
    """Largest batch tile <= `desired` that still leaves >= 2 grid steps when the
    (sublane-rounded) batch allows it — keeps both v7x TensorCores busy."""
    b8 = _round_up(B, 8)
    half = _round_up((b8 + 1) // 2, 8)
    return max(8, min(desired, half))


def prepare_params(params):
    """One-time packing of the per-model constants (call once, reuse per batch).

    params: (w1, b1, w2, b2, w3, b3), weights stored transposed (in_dim, out_dim),
    biases (1, out_dim).  Zero padding is exact: padded input columns hit zero
    weight rows, padded hidden units get bias 0 -> relu 0, padded output columns
    are all-zero and sliced off by the wrapper.
    """
    w1, b1, w2, b2, w3, b3 = params
    d_in = w1.shape[0]
    d_in_pad = _round_up(d_in, 8)
    w1p = _pad_to(w1, (d_in_pad, PAD)).astype(jnp.bfloat16)
    w23 = jnp.stack([_pad_to(w2, (PAD, PAD)), _pad_to(w3, (PAD, PAD))]).astype(jnp.bfloat16)
    b_stack = jnp.stack(
        [_pad_to(b1[0], (PAD,)), _pad_to(b2[0], (PAD,)), _pad_to(b3[0], (PAD,))]
    ).astype(jnp.float32)
    return w1p, w23, b_stack


def logistic_regression_forward(x, prepared, out_dim, *, tile_b=None):
    """x: (B, input_dim) f32; prepared: output of `prepare_params`."""
    w1p, w23, b_stack = prepared
    B, d_in = x.shape
    d_in_pad = w1p.shape[0]
    assert d_in <= d_in_pad and out_dim <= PAD

    if tile_b is None:
        tile_b = _pick_tile_b(B)
    grid_b = pl.cdiv(_round_up(B, 8), tile_b)
    B_pad = grid_b * tile_b

    # Single cheap prep pass over x: pad batch/feature remainder, cast to bf16.
    x_p = _pad_to(x, (B_pad, d_in_pad)).astype(jnp.bfloat16)

    cost = pl.CostEstimate(
        flops=2 * B_pad * (d_in_pad * PAD + 2 * PAD * PAD),
        transcendentals=0,
        bytes_accessed=int(
            x_p.size * 2            # x read (bf16)
            + B_pad * PAD * 2       # output write (bf16)
            + w1p.size * 2 + w23.size * 2 + b_stack.size * 4  # resident weights, once
        ),
    )

    out_pad = pl.pallas_call(
        mlp_kernel,
        out_shape=jax.ShapeDtypeStruct((B_pad, PAD), jnp.bfloat16),
        grid_spec=pltpu.PrefetchScalarGridSpec(
            num_scalar_prefetch=0,
            grid=(grid_b,),
            in_specs=[
                pl.BlockSpec((tile_b, d_in_pad), lambda i: (i, 0)),   # x tile (pipelined)
                pl.BlockSpec((d_in_pad, PAD), lambda i: (0, 0)),      # W1 (VMEM-resident)
                pl.BlockSpec((2, PAD, PAD), lambda i: (0, 0, 0)),     # W2/W3 (VMEM-resident)
                pl.BlockSpec((3, PAD), lambda i: (0, 0)),             # biases (VMEM-resident)
            ],
            out_specs=pl.BlockSpec((tile_b, PAD), lambda i: (i, 0)),  # lane-dense bf16 slab
        ),
        compiler_params=pltpu.CompilerParams(
            dimension_semantics=("parallel",),  # v7x: shard batch across both TCs
        ),
        cost_estimate=cost,
    )(x_p, w1p, w23, b_stack)

    # Tiny slice; cast back to f32 so the caller sees the module's output dtype.
    return out_pad[:B, :out_dim].astype(jnp.float32)


def init_linear(key, in_dim, out_dim):
    # Mirrors torch.nn.Linear default init: U(-1/sqrt(fan_in), 1/sqrt(fan_in)).
    kw, kb = jax.random.split(key)
    bound = 1.0 / math.sqrt(in_dim)
    # weight stored transposed: (in_dim, out_dim)
    w = jax.random.uniform(kw, (in_dim, out_dim), jnp.float32, -bound, bound)
    b = jax.random.uniform(kb, (1, out_dim), jnp.float32, -bound, bound)
    return w, b


def reference_forward(x, params):
    w1, b1, w2, b2, w3, b3 = params
    h1 = jnp.maximum(x @ w1 + b1, 0.0)
    h2 = jnp.maximum(h1 @ w2 + b2, 0.0)
    return h2 @ w3 + b3


if __name__ == "__main__":
    input_dim = 32
    output_dim = 8
    batch = 8

    key = jax.random.PRNGKey(0)
    k_x, k1, k2, k3 = jax.random.split(key, 4)

    x = jax.random.normal(k_x, (batch, input_dim), jnp.float32)

    # linear_hidden_1: input_dim -> 10, linear_hidden_2: 10 -> 10, linear: 10 -> output_dim
    w1, b1 = init_linear(k1, input_dim, 10)
    w2, b2 = init_linear(k2, 10, 10)
    w3, b3 = init_linear(k3, 10, output_dim)
    params = (w1, b1, w2, b2, w3, b3)

    prepared = prepare_params(params)  # one-time per-model packing (hoisted out of forward)

    out = logistic_regression_forward(x, prepared, output_dim)
    out = jax.block_until_ready(out)

    ref = reference_forward(x, params)  # pure f32 reference
    assert out.shape == (batch, output_dim)
    # bf16 operands / bf16 output store with f32 accumulation -> bf16-level tolerance.
    assert jnp.allclose(out, ref, atol=3e-2, rtol=3e-2), (
        f"max abs err {jnp.max(jnp.abs(out - ref)):.4e}"
    )

    print("KERNEL_OK")
</pallas_src>

<mosaic_0001>
module attributes {stable_mosaic.version = 11 : i64} {
  func.func @mlp_kernel(%arg0: i32, %arg1: memref<8x32xbf16, #tpu.memory_space<vmem>>, %arg2: memref<32x128xbf16, #tpu.memory_space<vmem>>, %arg3: memref<2x128x128xbf16, #tpu.memory_space<vmem>>, %arg4: memref<3x128xf32, #tpu.memory_space<vmem>>, %arg5: memref<8x128xbf16, #tpu.memory_space<vmem>>) attributes {dimension_semantics = [#tpu.dimension_semantics<parallel>], iteration_bounds = array<i64: 1>, scalar_prefetch = 0 : i64, scratch_operands = 0 : i64, tpu.core_type = #tpu.core_type<tc>, window_params = [{transform_indices = @transform_0, window_bounds = array<i64: 8, 32>}, {pipeline_mode = #tpu.pipeline_mode<synchronous>, transform_indices = @transform_1, window_bounds = array<i64: 32, 128>}, {pipeline_mode = #tpu.pipeline_mode<synchronous>, transform_indices = @transform_2, window_bounds = array<i64: 2, 128, 128>}, {pipeline_mode = #tpu.pipeline_mode<synchronous>, transform_indices = @transform_3, window_bounds = array<i64: 3, 128>}, {transform_indices = @transform_4, window_bounds = array<i64: 8, 128>}]} {
    %c0 = arith.constant 0 : index
    %c0_0 = arith.constant 0 : index
    %0 = vector.load %arg1[%c0, %c0_0] : memref<8x32xbf16, #tpu.memory_space<vmem>>, vector<8x32xbf16>
    %c0_1 = arith.constant 0 : index
    %c0_2 = arith.constant 0 : index
    %1 = vector.load %arg2[%c0_1, %c0_2] : memref<32x128xbf16, #tpu.memory_space<vmem>>, vector<32x128xbf16>
    %cst = arith.constant dense<0.000000e+00> : vector<8x128xf32>
    %2 = tpu.matmul %0, %1, %cst {dimension_numbers = #tpu.dot_dimension_numbers<[1], [0], [0], [1], [0, 0, 1, 1], [], []>} : vector<8x32xbf16>, vector<32x128xbf16>, vector<8x128xf32> -> vector<8x128xf32>
    %c0_3 = arith.constant 0 : index
    %c0_4 = arith.constant 0 : index
    %3 = vector.load %arg4[%c0_3, %c0_4] : memref<3x128xf32, #tpu.memory_space<vmem>>, vector<1x128xf32>
    %4 = vector.broadcast %3 : vector<1x128xf32> to vector<8x128xf32>
    %5 = arith.addf %2, %4 : vector<8x128xf32>
    %cst_5 = arith.constant 0.000000e+00 : f32
    %6 = vector.broadcast %cst_5 : f32 to vector<8x128xf32>
    %7 = arith.maximumf %5, %6 : vector<8x128xf32>
    %8 = arith.truncf %7 : vector<8x128xf32> to vector<8x128xbf16>
    %c0_6 = arith.constant 0 : index
    %c0_7 = arith.constant 0 : index
    %c0_8 = arith.constant 0 : index
    %9 = vector.load %arg3[%c0_6, %c0_7, %c0_8] : memref<2x128x128xbf16, #tpu.memory_space<vmem>>, vector<1x128x128xbf16>
    %10 = vector.shape_cast %9 : vector<1x128x128xbf16> to vector<128x128xbf16>
    %cst_9 = arith.constant dense<0.000000e+00> : vector<8x128xf32>
    %11 = tpu.matmul %8, %10, %cst_9 {dimension_numbers = #tpu.dot_dimension_numbers<[1], [0], [0], [1], [0, 0, 1, 1], [], []>} : vector<8x128xbf16>, vector<128x128xbf16>, vector<8x128xf32> -> vector<8x128xf32>
    %c1 = arith.constant 1 : index
    %c0_10 = arith.constant 0 : index
    %12 = vector.load %arg4[%c1, %c0_10] : memref<3x128xf32, #tpu.memory_space<vmem>>, vector<1x128xf32>
    %13 = vector.broadcast %12 : vector<1x128xf32> to vector<8x128xf32>
    %14 = arith.addf %11, %13 : vector<8x128xf32>
    %cst_11 = arith.constant 0.000000e+00 : f32
    %15 = vector.broadcast %cst_11 : f32 to vector<8x128xf32>
    %16 = arith.maximumf %14, %15 : vector<8x128xf32>
    %17 = arith.truncf %16 : vector<8x128xf32> to vector<8x128xbf16>
    %c1_12 = arith.constant 1 : index
    %c0_13 = arith.constant 0 : index
    %c0_14 = arith.constant 0 : index
    %18 = vector.load %arg3[%c1_12, %c0_13, %c0_14] : memref<2x128x128xbf16, #tpu.memory_space<vmem>>, vector<1x128x128xbf16>
    %19 = vector.shape_cast %18 : vector<1x128x128xbf16> to vector<128x128xbf16>
    %cst_15 = arith.constant dense<0.000000e+00> : vector<8x128xf32>
    %20 = tpu.matmul %17, %19, %cst_15 {dimension_numbers = #tpu.dot_dimension_numbers<[1], [0], [0], [1], [0, 0, 1, 1], [], []>} : vector<8x128xbf16>, vector<128x128xbf16>, vector<8x128xf32> -> vector<8x128xf32>
    %c2 = arith.constant 2 : index
    %c0_16 = arith.constant 0 : index
    %21 = vector.load %arg4[%c2, %c0_16] : memref<3x128xf32, #tpu.memory_space<vmem>>, vector<1x128xf32>
    %22 = vector.broadcast %21 : vector<1x128xf32> to vector<8x128xf32>
    %23 = arith.addf %20, %22 : vector<8x128xf32>
    %24 = arith.truncf %23 : vector<8x128xf32> to vector<8x128xbf16>
    %c0_17 = arith.constant 0 : index
    %c0_18 = arith.constant 0 : index
    %25 = vector.load %arg5[%c0_17, %c0_18] : memref<8x128xbf16, #tpu.memory_space<vmem>>, vector<8x128xbf16>
    tpu.vector_store %arg5[%c0_17, %c0_18], %24 {strides = array<i32>} : memref<8x128xbf16, #tpu.memory_space<vmem>>, vector<8x128xbf16>,
    return
  }
  func.func @transform_0(%arg0: i32) -> (i32, i32) {
    %c0_i32 = arith.constant 0 : i32
    %c0_i32_0 = arith.constant 0 : i32
    return %arg0, %c0_i32 : i32, i32
  }
  func.func @transform_1(%arg0: i32) -> (i32, i32) {
    %c0_i32 = arith.constant 0 : i32
    %c0_i32_0 = arith.constant 0 : i32
    %c0_i32_1 = arith.constant 0 : i32
    return %c0_i32, %c0_i32_0 : i32, i32
  }
  func.func @transform_2(%arg0: i32) -> (i32, i32, i32) {
    %c0_i32 = arith.constant 0 : i32
    %c0_i32_0 = arith.constant 0 : i32
    %c0_i32_1 = arith.constant 0 : i32
    %c0_i32_2 = arith.constant 0 : i32
    return %c0_i32, %c0_i32_0, %c0_i32_1 : i32, i32, i32
  }
  func.func @transform_3(%arg0: i32) -> (i32, i32) {
    %c0_i32 = arith.constant 0 : i32
    %c0_i32_0 = arith.constant 0 : i32
    %c0_i32_1 = arith.constant 0 : i32
    return %c0_i32, %c0_i32_0 : i32, i32
  }
  func.func @transform_4(%arg0: i32) -> (i32, i32) {
    %c0_i32 = arith.constant 0 : i32
    %c0_i32_0 = arith.constant 0 : i32
    return %arg0, %c0_i32 : i32, i32
  }
}

</mosaic_0001>

<llo_original>
// kernel: tpu_custom_call.1
$region0: #{tpu_custom_call.1}
  #allocation0 [shape = 'u32[]', space=smem, size = 0x4, offset = 0x4, fixed_abs, tag = 'smem constant byte address 0x4 - core index']
  #allocation1 [shape = 'u32[144,128]{1,0:T(1,128)}', space=vmem, size = 0x12000, scoped, tag = 'internal scratch']
  %s0 = inlined_call_operand.hbm [shape: bf16[8,32], index: 0, kind: input, shape index: {}]
  %s1 = inlined_call_operand.hbm [shape: bf16[32,128], index: 1, kind: input, shape index: {}]
  %s2 = inlined_call_operand.hbm [shape: bf16[2,128,128], index: 2, kind: input, shape index: {}]
  %s3 = inlined_call_operand.vmem [shape: f32[3,128], index: 3, kind: input, shape index: {}]
  %s4 = inlined_call_operand.hbm [shape: bf16[8,128], index: 4, kind: output, shape index: {}]
  %s5 = sld [smem:[#allocation0]]
  $region38: #{tpu_custom_call.1} parent=0
    _
  %s7 = ssub.s32 1, %s5
  %s8 = scalar_select 0, %s7, %s5
  $region1: #{tpu_custom_call.1} parent=0
    #allocation2 [shape = 'u8[2048]{0}', space=vmem, size = 0x800, scoped, tag = 'input window, operand 0, single buffered']
    #allocation3 [shape = 's32[1]{0}', space=sflag, size = 0x4, scoped, tag = 'scoped memory for tpu_custom_call.1']
    #allocation4 [shape = 's32[1]{0}', space=sflag, size = 0x4, scoped, tag = 'scoped memory for tpu_custom_call.1']
    #allocation5 [shape = 'u8[8192]{0}', space=vmem, size = 0x2000, scoped, tag = 'input window, operand 1, single buffered']
    #allocation6 [shape = 's32[1]{0}', space=sflag, size = 0x4, scoped, tag = 'scoped memory for tpu_custom_call.1']
    #allocation7 [shape = 'u8[65536]{0}', space=vmem, size = 0x10000, scoped, tag = 'input window, operand 2, single buffered']
    #allocation8 [shape = 'u8[2048]{0}', space=vmem, size = 0x800, scoped, tag = 'output window, operand 0, single buffered']
    %9 = vsyncpa [#allocation3], 0
    %10 = vsyncpa [#allocation6], 0
    %11 = vsyncpa [#allocation4], 0
    // Predicated region
    $region2: #{tpu_custom_call.1} parent=1 // pred_check
      _
    $region3: #{tpu_custom_call.1} parent=1 // pred_check_branch
      %13 = sbr.rel (0) target = $region5
    $region4: #{tpu_custom_call.1} parent=1 // pred_region
      %s15 = ssub.s32 64, 64
      %16 = vsyncadd [#allocation3], %s15
      %s18 = sshll.u32 [#allocation2], 4
      %s19 = int_to_ptr.vmem [resolvable:$true] %s18
      %21 = dma.hbm_to_vmem [thread:$0]  %s0, 64, %s19, [#allocation3]
    $region5: #{tpu_custom_call.1} parent=1 // pred_fallthru
      _
    // Predicated region
    $region6: #{tpu_custom_call.1} parent=1 // pred_check
      _
    $region7: #{tpu_custom_call.1} parent=1 // pred_check_branch
      %23 = sbr.rel (0) target = $region9
    $region8: #{tpu_custom_call.1} parent=1 // pred_region
      %s25 = ssub.s32 256, 256
      %26 = vsyncadd [#allocation6], %s25
      %s27 = sshll.u32 [#allocation5], 4
      %s28 = int_to_ptr.vmem [resolvable:$true] %s27
      %33 = dma.hbm_to_vmem [thread:$0]  %s1, 256, %s28, [#allocation6], 64, 64, 4
    $region9: #{tpu_custom_call.1} parent=1 // pred_fallthru
      _
    // Predicated region
    $region10: #{tpu_custom_call.1} parent=1 // pred_check
      _
    $region11: #{tpu_custom_call.1} parent=1 // pred_check_branch
      %35 = sbr.rel (0) target = $region13
    $region12: #{tpu_custom_call.1} parent=1 // pred_region
      %s37 = ssub.s32 2048, 2048
      %38 = vsyncadd [#allocation6], %s37
      %s39 = sshll.u32 [#allocation7], 4
      %s40 = int_to_ptr.vmem [resolvable:$true] %s39
      %45 = dma.hbm_to_vmem [thread:$0]  %s2, 2048, %s40, [#allocation6], 64, 64, 4
    $region13: #{tpu_custom_call.1} parent=1 // pred_fallthru
      _
    // Predicated region
    $region14: #{tpu_custom_call.1} parent=1 // pred_check
      _
    $region15: #{tpu_custom_call.1} parent=1 // pred_check_branch
      %47 = sbr.rel (0) target = $region17
    $region16: #{tpu_custom_call.1} parent=1 // pred_region
      _
    $region17: #{tpu_custom_call.1} parent=1 // pred_fallthru
      _
    // Predicated region
    $region18: #{tpu_custom_call.1} parent=1 // pred_check
      _
    $region19: #{tpu_custom_call.1} parent=1 // pred_check_branch
      %49 = sbr.rel (0) target = $region21
    $region20: #{tpu_custom_call.1} parent=1 // pred_region
      %50 = dma.done [#allocation3], 64
    $region21: #{tpu_custom_call.1} parent=1 // pred_fallthru
      _
    // Predicated region
    $region22: #{tpu_custom_call.1} parent=1 // pred_check
      _
    $region23: #{tpu_custom_call.1} parent=1 // pred_check_branch
      %52 = sbr.rel (0) target = $region25
    $region24: #{tpu_custom_call.1} parent=1 // pred_region
      %53 = dma.done [#allocation6], 256
    $region25: #{tpu_custom_call.1} parent=1 // pred_fallthru
      _
    // Predicated region
    $region26: #{tpu_custom_call.1} parent=1 // pred_check
      _
    $region27: #{tpu_custom_call.1} parent=1 // pred_check_branch
      %55 = sbr.rel (0) target = $region29
    $region28: #{tpu_custom_call.1} parent=1 // pred_region
      %56 = dma.done [#allocation6], 2048
    $region29: #{tpu_custom_call.1} parent=1 // pred_fallthru
      _
    %v58 = vld [vmem:[#allocation2] sm:$0xf]
    %v59 = vld [vmem:[#allocation5] sm:$0xf]
    %v60 = vld [vmem:[#allocation5 + $0x4] sm:$0xf]
    %v61 = vld [vmem:[#allocation5 + $0x8] sm:$0xf]
    %v62 = vld [vmem:[#allocation5 + $0xc] sm:$0xf]
    %v63 = vld [vmem:[%s3] sm:$0x1]
    %v64 = vlaneseq
    %v65 = vshrl.u32 %v64, 7
    %v66 = vsub.s32 0, %v65
    %v67 = vrot.slane %v63, %v66
    %v72 = vunpack.c.l.b16 %v59
    %v73 = vunpack.c.l.b16 %v60
    %v74 = vunpack.c.l.b16 %v61
    %v75 = vunpack.c.l.b16 %v62
    %v76 = vpack.c.b16 %v73, %v72
    %v77 = vpack.c.b16 %v75, %v74
    %vm80 = vcmask 261120
    %v82 = vsel %vm80, %v58, 0
    %84 = vmatprep.subr.bf16.mxu0 0
    %85 = vmatpush1.bf16.msra.mxu0 0
    %86 = vmatprep.subr.bf16.mxu0 0
    %87 = vmatpush1.bf16.msra.mxu0 0
    %88 = vmatprep.subr.bf16.mxu0 0
    %89 = vmatpush1.bf16.msra.mxu0 0
    %90 = vmatprep.subr.bf16.mxu0 0
    %91 = vmatpush1.bf16.msra.mxu0 0
    %92 = vmatprep.subr.bf16.mxu0 0
    %93 = vmatpush1.bf16.msra.mxu0 0
    %94 = vmatprep.subr.bf16.mxu0 0
    %95 = vmatpush1.bf16.msra.mxu0 0
    %96 = vmatprep.subr.bf16.mxu0 0
    %97 = vmatpush1.bf16.msra.mxu0 %v77
    %98 = vmatprep.subr.bf16.mxu0 0
    %99 = vmatpush1.bf16.msra.mxu0 %v76
    %100 = vmatprep.subr.bf16.mxu0 0
    %101 = vmatpush2.bf16.msra.mxu0 0
    %102 = vmatprep.subr.bf16.mxu0 0
    %103 = vmatpush2.bf16.msra.mxu0 0
    %104 = vmatprep.subr.bf16.mxu0 0
    %105 = vmatpush2.bf16.msra.mxu0 0
    %106 = vmatprep.subr.bf16.mxu0 0
    %107 = vmatpush2.bf16.msra.mxu0 0
    %108 = vmatprep.subr.bf16.mxu0 0
    %109 = vmatpush2.bf16.msra.mxu0 0
    %110 = vmatprep.subr.bf16.mxu0 0
    %111 = vmatpush2.bf16.msra.mxu0 0
    %112 = vmatprep.subr.bf16.mxu0 0
    %113 = vmatpush2.bf16.msra.mxu0 0
    %114 = vmatprep.subr.bf16.mxu0 0
    %115 = vmatpush2.bf16.msra.mxu0 0
    %116 = vmatprep.mubr.bf16.mxu0 0
    %117 = vmatmul.mubr.bf16.gmra.mxu0 %v82
    %v118 = vpop.f32.mrf.mxu0
    %v119 = vadd.f32 %v67, %v118
    %v120 = vpop.f32.mrf.mxu0
    %v121 = vpop.f32.mrf.mxu0
    %v122 = vpop.f32.mrf.mxu0
    %123 = vdwg.mxu0
    %v124 = vmax.f32 %v119, 0.0
    %v125 = vpack.c.bf16 %v124, %v124
    %v126 = vld [vmem:[#allocation7] sm:$0xf]
    %v127 = vld [vmem:[#allocation7 + $0x4] sm:$0xf]
    %v128 = vld [vmem:[#allocation7 + $0x8] sm:$0xf]
    %v129 = vld [vmem:[#allocation7 + $0xc] sm:$0xf]
    %v130 = vld [vmem:[#allocation7 + $0x10] sm:$0xf]
    %v131 = vld [vmem:[#allocation7 + $0x14] sm:$0xf]
    %v132 = vld [vmem:[#allocation7 + $0x18] sm:$0xf]
    %v133 = vld [vmem:[#allocation7 + $0x1c] sm:$0xf]
    %v134 = vld [vmem:[#allocation7 + $0x20] sm:$0xf]
    %v135 = vld [vmem:[#allocation7 + $0x24] sm:$0xf]
    %v136 = vld [vmem:[#allocation7 + $0x28] sm:$0xf]
    %v137 = vld [vmem:[#allocation7 + $0x2c] sm:$0xf]
    %v138 = vld [vmem:[#allocation7 + $0x30] sm:$0xf]
    %v139 = vld [vmem:[#allocation7 + $0x34] sm:$0xf]
    %v140 = vld [vmem:[#allocation7 + $0x38] sm:$0xf]
    %v141 = vld [vmem:[#allocation7 + $0x3c] sm:$0xf]
    %v142 = vld [vmem:[%s3 + $0x1] sm:$0x1]
    %v143 = vlaneseq
    %v144 = vshrl.u32 %v143, 7
    %v145 = vsub.s32 0, %v144
    %v146 = vrot.slane %v142, %v145
    %v163 = vunpack.c.l.b16 %v126
    %v164 = vunpack.c.l.b16 %v127
    %v165 = vunpack.c.l.b16 %v128
    %v166 = vunpack.c.l.b16 %v129
    %v167 = vunpack.c.l.b16 %v130
    %v168 = vunpack.c.l.b16 %v131
    %v169 = vunpack.c.l.b16 %v132
    %v170 = vunpack.c.l.b16 %v133
    %v171 = vunpack.c.l.b16 %v134
    %v172 = vunpack.c.l.b16 %v135
    %v173 = vunpack.c.l.b16 %v136
    %v174 = vunpack.c.l.b16 %v137
    %v175 = vunpack.c.l.b16 %v138
    %v176 = vunpack.c.l.b16 %v139
    %v177 = vunpack.c.l.b16 %v140
    %v178 = vunpack.c.l.b16 %v141
    %v179 = vpack.c.b16 %v164, %v163
    %v180 = vpack.c.b16 %v166, %v165
    %v181 = vpack.c.b16 %v168, %v167
    %v182 = vpack.c.b16 %v170, %v169
    %v183 = vpack.c.b16 %v172, %v171
    %v184 = vpack.c.b16 %v174, %v173
    %v185 = vpack.c.b16 %v176, %v175
    %v186 = vpack.c.b16 %v178, %v177
    %195 = vmatprep.subr.bf16.mxu0 0
    %196 = vmatpush1.bf16.msra.mxu0 %v186
    %197 = vmatprep.subr.bf16.mxu0 0
    %198 = vmatpush1.bf16.msra.mxu0 %v185
    %199 = vmatprep.subr.bf16.mxu0 0
    %200 = vmatpush1.bf16.msra.mxu0 %v184
    %201 = vmatprep.subr.bf16.mxu0 0
    %202 = vmatpush1.bf16.msra.mxu0 %v183
    %203 = vmatprep.subr.bf16.mxu0 0
    %204 = vmatpush1.bf16.msra.mxu0 %v182
    %205 = vmatprep.subr.bf16.mxu0 0
    %206 = vmatpush1.bf16.msra.mxu0 %v181
    %207 = vmatprep.subr.bf16.mxu0 0
    %208 = vmatpush1.bf16.msra.mxu0 %v180
    %209 = vmatprep.subr.bf16.mxu0 0
    %210 = vmatpush1.bf16.msra.mxu0 %v179
    %211 = vmatprep.subr.bf16.mxu0 0
    %212 = vmatpush2.bf16.msra.mxu0 0
    %213 = vmatprep.subr.bf16.mxu0 0
    %214 = vmatpush2.bf16.msra.mxu0 0
    %215 = vmatprep.subr.bf16.mxu0 0
    %216 = vmatpush2.bf16.msra.mxu0 0
    %217 = vmatprep.subr.bf16.mxu0 0
    %218 = vmatpush2.bf16.msra.mxu0 0
    %219 = vmatprep.subr.bf16.mxu0 0
    %220 = vmatpush2.bf16.msra.mxu0 0
    %221 = vmatprep.subr.bf16.mxu0 0
    %222 = vmatpush2.bf16.msra.mxu0 0
    %223 = vmatprep.subr.bf16.mxu0 0
    %224 = vmatpush2.bf16.msra.mxu0 0
    %225 = vmatprep.subr.bf16.mxu0 0
    %226 = vmatpush2.bf16.msra.mxu0 0
    %227 = vmatprep.mubr.bf16.mxu0 0
    %228 = vmatmul.mubr.bf16.gmra.mxu0 %v125
    %v229 = vpop.f32.mrf.mxu0
    %v230 = vadd.f32 %v146, %v229
    %v231 = vpop.f32.mrf.mxu0
    %v232 = vpop.f32.mrf.mxu0
    %v233 = vpop.f32.mrf.mxu0
    %234 = vdwg.mxu0
    %v235 = vmax.f32 %v230, 0.0
    %v236 = vpack.c.bf16 %v235, %v235
    %s237 = scalar_lea.vmem [#allocation7], 64
    %v238 = vld [vmem:[%s237] sm:$0xf]
    %v239 = vld [vmem:[%s237 + $0x4] sm:$0xf]
    %v240 = vld [vmem:[%s237 + $0x8] sm:$0xf]
    %v241 = vld [vmem:[%s237 + $0xc] sm:$0xf]
    %v242 = vld [vmem:[%s237 + $0x10] sm:$0xf]
    %v243 = vld [vmem:[%s237 + $0x14] sm:$0xf]
    %v244 = vld [vmem:[%s237 + $0x18] sm:$0xf]
    %v245 = vld [vmem:[%s237 + $0x1c] sm:$0xf]
    %v246 = vld [vmem:[%s237 + $0x20] sm:$0xf]
    %v247 = vld [vmem:[%s237 + $0x24] sm:$0xf]
    %v248 = vld [vmem:[%s237 + $0x28] sm:$0xf]
    %v249 = vld [vmem:[%s237 + $0x2c] sm:$0xf]
    %v250 = vld [vmem:[%s237 + $0x30] sm:$0xf]
    %v251 = vld [vmem:[%s237 + $0x34] sm:$0xf]
    %v252 = vld [vmem:[%s237 + $0x38] sm:$0xf]
    %v253 = vld [vmem:[%s237 + $0x3c] sm:$0xf]
    %v254 = vld [vmem:[%s3 + $0x2] sm:$0x1]
    %v255 = vlaneseq
    %v256 = vshrl.u32 %v255, 7
    %v257 = vsub.s32 0, %v256
    %v258 = vrot.slane %v254, %v257
    %v275 = vunpack.c.l.b16 %v238
    %v276 = vunpack.c.l.b16 %v239
    %v277 = vunpack.c.l.b16 %v240
    %v278 = vunpack.c.l.b16 %v241
    %v279 = vunpack.c.l.b16 %v242
    %v280 = vunpack.c.l.b16 %v243
    %v281 = vunpack.c.l.b16 %v244
    %v282 = vunpack.c.l.b16 %v245
    %v283 = vunpack.c.l.b16 %v246
    %v284 = vunpack.c.l.b16 %v247
    %v285 = vunpack.c.l.b16 %v248
    %v286 = vunpack.c.l.b16 %v249
    %v287 = vunpack.c.l.b16 %v250
    %v288 = vunpack.c.l.b16 %v251
    %v289 = vunpack.c.l.b16 %v252
    %v290 = vunpack.c.l.b16 %v253
    %v291 = vpack.c.b16 %v276, %v275
    %v292 = vpack.c.b16 %v278, %v277
    %v293 = vpack.c.b16 %v280, %v279
    %v294 = vpack.c.b16 %v282, %v281
    %v295 = vpack.c.b16 %v284, %v283
    %v296 = vpack.c.b16 %v286, %v285
    %v297 = vpack.c.b16 %v288, %v287
    %v298 = vpack.c.b16 %v290, %v289
    %307 = vmatprep.subr.bf16.mxu0 0
    %308 = vmatpush1.bf16.msra.mxu0 %v298
    %309 = vmatprep.subr.bf16.mxu0 0
    %310 = vmatpush1.bf16.msra.mxu0 %v297
    %311 = vmatprep.subr.bf16.mxu0 0
    %312 = vmatpush1.bf16.msra.mxu0 %v296
    %313 = vmatprep.subr.bf16.mxu0 0
    %314 = vmatpush1.bf16.msra.mxu0 %v295
    %315 = vmatprep.subr.bf16.mxu0 0
    %316 = vmatpush1.bf16.msra.mxu0 %v294
    %317 = vmatprep.subr.bf16.mxu0 0
    %318 = vmatpush1.bf16.msra.mxu0 %v293
    %319 = vmatprep.subr.bf16.mxu0 0
    %320 = vmatpush1.bf16.msra.mxu0 %v292
    %321 = vmatprep.subr.bf16.mxu0 0
    %322 = vmatpush1.bf16.msra.mxu0 %v291
    %323 = vmatprep.subr.bf16.mxu0 0
    %324 = vmatpush2.bf16.msra.mxu0 0
    %325 = vmatprep.subr.bf16.mxu0 0
    %326 = vmatpush2.bf16.msra.mxu0 0
    %327 = vmatprep.subr.bf16.mxu0 0
    %328 = vmatpush2.bf16.msra.mxu0 0
    %329 = vmatprep.subr.bf16.mxu0 0
    %330 = vmatpush2.bf16.msra.mxu0 0
    %331 = vmatprep.subr.bf16.mxu0 0
    %332 = vmatpush2.bf16.msra.mxu0 0
    %333 = vmatprep.subr.bf16.mxu0 0
    %334 = vmatpush2.bf16.msra.mxu0 0
    %335 = vmatprep.subr.bf16.mxu0 0
    %336 = vmatpush2.bf16.msra.mxu0 0
    %337 = vmatprep.subr.bf16.mxu0 0
    %338 = vmatpush2.bf16.msra.mxu0 0
    %339 = vmatprep.mubr.bf16.mxu0 0
    %340 = vmatmul.mubr.bf16.gmra.mxu0 %v236
    %v341 = vpop.f32.mrf.mxu0
    %v342 = vadd.f32 %v258, %v341
    %v343 = vpop.f32.mrf.mxu0
    %v344 = vpop.f32.mrf.mxu0
    %v345 = vpop.f32.mrf.mxu0
    %346 = vdwg.mxu0
    %v347 = vpack.c.bf16 %v342, %v342
    %348 = vst [vmem:[#allocation8] sm:$0xf] %v347
    // Predicated region
    $region30: #{tpu_custom_call.1} parent=1 // pred_check
      _
    $region31: #{tpu_custom_call.1} parent=1 // pred_check_branch
      %350 = sbr.rel (0) target = $region33
    $region32: #{tpu_custom_call.1} parent=1 // pred_region
      %s352 = ssub.s32 64, 64
      %353 = vsyncadd [#allocation4], %s352
      %s355 = sshll.u32 [#allocation8], 4
      %s356 = int_to_ptr.vmem [resolvable:$true] %s355
      %358 = dma.vmem_to_hbm [thread:$0]  %s356, 64, %s4, [#allocation4]
    $region33: #{tpu_custom_call.1} parent=1 // pred_fallthru
      _
    // Predicated region
    $region34: #{tpu_custom_call.1} parent=1 // pred_check
      _
    $region35: #{tpu_custom_call.1} parent=1 // pred_check_branch
      %360 = sbr.rel (0) target = $region37
    $region36: #{tpu_custom_call.1} parent=1 // pred_region
      %361 = dma.done [#allocation4], 64
    $region37: #{tpu_custom_call.1} parent=1 // pred_fallthru
      _
    %362 = vsyncpa [#allocation3], 1
    %363 = vsyncpa [#allocation6], 1
    %364 = vsyncpa [#allocation4], 1

</llo_original>
